<compile_context>
chip_gen: v7x
topology: tpu7x:2x2x1
jax: 0.10.0
libtpu: 0.0.40
codegen_flags: <defaults>
</compile_context>

<pallas_src>
import jax
import jax.numpy as jnp
from jax.experimental import pallas as pl
from jax.experimental.pallas import tpu as pltpu


def mlp_kernel(xt_ref, cdt_ref, w1t_ref, b1t_ref, w2ht_ref, b2ht_ref, o_ref):
    """One batch tile of the fused MLP forward, computed transposed
    (batch rides the lane axis -> lane-dense loads and stores).

    xt_ref   : [D_in, TB]  concatenated input, transposed
    cdt_ref  : [1,    TB]  curr_distance (== last_dist residual), transposed
    w1t_ref  : [L, D_in]   first Linear weight, transposed (VMEM-resident)
    b1t_ref  : [L, 1]      first Linear bias (column)
    w2ht_ref : [K, L]      second Linear weight, transposed, /2 folded in
    b2ht_ref : [K, 1]      second Linear bias, /2 folded in
    o_ref    : [K, TB]     output tile (transposed)
    """
    # TODO(synk): training-mode dropout not implemented (inference identity).
    h = jnp.dot(w1t_ref[...], xt_ref[...],
                preferred_element_type=jnp.float32) + b1t_ref[...]
    h = jnp.maximum(h, 0.0)                                        # ReLU
    y = jnp.dot(w2ht_ref[...], h,
                preferred_element_type=jnp.float32) + b2ht_ref[...]
    o_ref[...] = (y + cdt_ref[...]).astype(o_ref.dtype)


def prepare_params(w1, b1, w2, b2, *, param_dtype=jnp.float32):
    """One-time parameter prep (NOT per call): transpose for the lane-dense
    (batch-on-lanes) kernel layout and fold the /2.0 into the second Linear."""
    w1 = jnp.asarray(w1, jnp.float32)
    w2 = jnp.asarray(w2, jnp.float32)
    return dict(
        w1_t=jnp.asarray(w1.T, param_dtype),                            # [L, D_in]
        b1_t=jnp.asarray(b1, jnp.float32).reshape(-1, 1),                # [L, 1]
        w2_half_t=jnp.asarray((w2 * 0.5).T, param_dtype),                # [K, L]
        b2_half_t=jnp.asarray(b2, jnp.float32).reshape(-1, 1) * 0.5,     # [K, 1]
    )


def _round_up(x, m):
    return ((x + m - 1) // m) * m


_LANE = 128
_PALLAS_MIN_BATCH = 1024   # below this, plain fused XLA beats the kernel overhead


def _xla_forward(prev_context, prev_distance, context, curr_distance, params):
    """Small-batch fast path: identical math, left to XLA fusion."""
    x = jnp.concatenate(
        [prev_context, prev_distance[:, None], context, curr_distance[:, None]],
        axis=-1).astype(jnp.float32)
    h = jnp.maximum(x @ params["w1_t"].astype(jnp.float32).T + params["b1_t"].T, 0.0)
    y = h @ params["w2_half_t"].astype(jnp.float32).T + params["b2_half_t"].T
    return y + curr_distance[:, None].astype(jnp.float32)


def mlp_forward(prev_context, prev_distance, context, curr_distance, params,
                *, block_batch=2048, activation_dtype=jnp.float32,
                force_pallas=False):
    """Pallas forward for model_type='mlp', eval=False (one_step path)."""
    B, C = prev_context.shape
    L, D_in = params["w1_t"].shape
    K = params["w2_half_t"].shape[0]
    assert D_in == 2 * (C + 1)

    if not force_pallas and B < _PALLAS_MIN_BATCH:
        return _xla_forward(prev_context, prev_distance, context,
                            curr_distance, params)

    # Concatenated input built ONCE in the wrapper (tiny fused XLA op), then
    # transposed so the batch rides the 128-wide lane axis inside the kernel.
    x = jnp.concatenate(
        [prev_context, prev_distance[:, None], context, curr_distance[:, None]],
        axis=-1).astype(activation_dtype)                        # [B, D_in]
    xt = x.T                                                      # [D_in, B]
    cdt = curr_distance.reshape(1, B).astype(jnp.float32)         # [1, B]

    # Batch tile: lane axis -> multiple of 128, large enough to amortize the
    # ~0.35 us per-step pipeline overhead; capped so the "parallel" grid keeps
    # >= 2 steps when the batch is big enough (shards across v7x's 2 TCs).
    tb = _round_up(min(block_batch, B), _LANE)
    if B >= 2 * _LANE:
        tb = min(tb, _round_up((B + 1) // 2, _LANE))
    Bp = _round_up(B, tb)
    if Bp != B:
        pad = Bp - B
        xt = jnp.pad(xt, ((0, 0), (0, pad)))
        cdt = jnp.pad(cdt, ((0, 0), (0, pad)))

    def batch_tile(rows):
        return pl.BlockSpec((rows, tb), lambda i: (0, i))

    def resident(shape):   # same block every step -> stays VMEM-resident
        return pl.BlockSpec(shape, lambda i: (0, 0))

    out_t = pl.pallas_call(
        mlp_kernel,
        out_shape=jax.ShapeDtypeStruct((K, Bp), jnp.float32),
        grid=(Bp // tb,),
        in_specs=[
            batch_tile(D_in),                    # x^T
            batch_tile(1),                       # curr_distance^T (residual)
            resident((L, D_in)),                 # W1^T
            resident((L, 1)),                    # b1
            resident((K, L)),                    # (W2/2)^T
            resident((K, 1)),                    # b2/2
        ],
        out_specs=batch_tile(K),
        compiler_params=pltpu.CompilerParams(
            dimension_semantics=("parallel",)),  # v7x: shard batch over both TCs
    )(xt, cdt, params["w1_t"], params["b1_t"],
      params["w2_half_t"], params["b2_half_t"])

    return out_t[:, :B].T


if __name__ == "__main__":
    # hyper_params: context_size=15, latent_size=32, horizon=True, horizon_K=4
    context_size = 15
    latent_size = 32
    horizon_K = 4
    B = 8
    D_in = 2 * (context_size + 1)  # = 32

    key = jax.random.PRNGKey(0)
    k1, k2, k3, k4, k5, k6, k7, k8 = jax.random.split(key, 8)

    def xavier_uniform(k, fan_in, fan_out, shape):
        bound = jnp.sqrt(6.0 / (fan_in + fan_out))
        return jax.random.uniform(k, shape, jnp.float32, -bound, bound)

    # Deterministic parameter init (xavier_uniform weights, small uniform bias).
    w1 = xavier_uniform(k1, D_in, latent_size, (D_in, latent_size))
    b1 = jax.random.uniform(k2, (latent_size,), jnp.float32, -0.1, 0.1)
    w2 = xavier_uniform(k3, latent_size, horizon_K, (latent_size, horizon_K))
    b2 = jax.random.uniform(k4, (horizon_K,), jnp.float32, -0.1, 0.1)

    # Example inputs (same roles as the PyTorch forward, eval=False).
    prev_context = jax.random.normal(k5, (B, context_size), jnp.float32)
    context = jax.random.normal(k6, (B, context_size), jnp.float32)
    prev_distance = jax.random.normal(k7, (B,), jnp.float32)
    curr_distance = jax.random.normal(k8, (B,), jnp.float32)

    params = prepare_params(w1, b1, w2, b2)   # one-time prep

    # Force the Pallas path even at this small demo batch (the default
    # heuristic would route B=8 to the fused-XLA fast path).
    out = mlp_forward(prev_context, prev_distance, context, curr_distance,
                      params, force_pallas=True)
    out = jax.block_until_ready(out)

    # Reference in plain JAX (exactly the PyTorch math, eval=False, horizon=True).
    x = jnp.concatenate(
        [prev_context, prev_distance[:, None], context, curr_distance[:, None]],
        axis=-1)
    h_ref = jnp.maximum(x @ w1 + b1[None, :], 0.0)
    ref = (h_ref @ w2 + b2[None, :]) / 2.0 + curr_distance[:, None]

    assert out.shape == (B, horizon_K)
    assert jnp.allclose(out, ref, atol=1e-5, rtol=1e-5)

    # Small-batch fast path gives the same result.
    out_fast = mlp_forward(prev_context, prev_distance, context, curr_distance,
                           params)
    out_fast = jax.block_until_ready(out_fast)
    assert jnp.allclose(out_fast, ref, atol=1e-5, rtol=1e-5)

    print("KERNEL_OK")
</pallas_src>

<mosaic_0001>
module attributes {stable_mosaic.version = 11 : i64} {
  func.func @mlp_kernel(%arg0: i32, %arg1: memref<32x128xf32, #tpu.memory_space<vmem>>, %arg2: memref<1x128xf32, #tpu.memory_space<vmem>>, %arg3: memref<32x32xf32, #tpu.memory_space<vmem>>, %arg4: memref<32x1xf32, #tpu.memory_space<vmem>>, %arg5: memref<4x32xf32, #tpu.memory_space<vmem>>, %arg6: memref<4x1xf32, #tpu.memory_space<vmem>>, %arg7: memref<4x128xf32, #tpu.memory_space<vmem>>) attributes {dimension_semantics = [#tpu.dimension_semantics<parallel>], iteration_bounds = array<i64: 1>, scalar_prefetch = 0 : i64, scratch_operands = 0 : i64, tpu.core_type = #tpu.core_type<tc>, window_params = [{transform_indices = @transform_0, window_bounds = array<i64: 32, 128>}, {transform_indices = @transform_1, window_bounds = array<i64: 1, 128>}, {pipeline_mode = #tpu.pipeline_mode<synchronous>, transform_indices = @transform_2, window_bounds = array<i64: 32, 32>}, {pipeline_mode = #tpu.pipeline_mode<synchronous>, transform_indices = @transform_3, window_bounds = array<i64: 32, 1>}, {pipeline_mode = #tpu.pipeline_mode<synchronous>, transform_indices = @transform_4, window_bounds = array<i64: 4, 32>}, {pipeline_mode = #tpu.pipeline_mode<synchronous>, transform_indices = @transform_5, window_bounds = array<i64: 4, 1>}, {transform_indices = @transform_6, window_bounds = array<i64: 4, 128>}]} {
    %c0 = arith.constant 0 : index
    %c0_0 = arith.constant 0 : index
    %0 = vector.load %arg3[%c0, %c0_0] : memref<32x32xf32, #tpu.memory_space<vmem>>, vector<32x32xf32>
    %c0_1 = arith.constant 0 : index
    %c0_2 = arith.constant 0 : index
    %1 = vector.load %arg1[%c0_1, %c0_2] : memref<32x128xf32, #tpu.memory_space<vmem>>, vector<32x128xf32>
    %cst = arith.constant dense<0.000000e+00> : vector<32x128xf32>
    %2 = tpu.matmul %0, %1, %cst {dimension_numbers = #tpu.dot_dimension_numbers<[1], [0], [0], [1], [0, 0, 1, 1], [], []>} : vector<32x32xf32>, vector<32x128xf32>, vector<32x128xf32> -> vector<32x128xf32>
    %c0_3 = arith.constant 0 : index
    %c0_4 = arith.constant 0 : index
    %3 = vector.load %arg4[%c0_3, %c0_4] : memref<32x1xf32, #tpu.memory_space<vmem>>, vector<32x1xf32>
    %4 = vector.broadcast %3 : vector<32x1xf32> to vector<32x128xf32>
    %5 = arith.addf %2, %4 : vector<32x128xf32>
    %cst_5 = arith.constant 0.000000e+00 : f32
    %6 = vector.broadcast %cst_5 : f32 to vector<32x128xf32>
    %7 = arith.maximumf %5, %6 : vector<32x128xf32>
    %c0_6 = arith.constant 0 : index
    %c0_7 = arith.constant 0 : index
    %8 = vector.load %arg5[%c0_6, %c0_7] : memref<4x32xf32, #tpu.memory_space<vmem>>, vector<4x32xf32>
    %cst_8 = arith.constant dense<0.000000e+00> : vector<4x128xf32>
    %9 = tpu.matmul %8, %7, %cst_8 {dimension_numbers = #tpu.dot_dimension_numbers<[1], [0], [0], [1], [0, 0, 1, 1], [], []>} : vector<4x32xf32>, vector<32x128xf32>, vector<4x128xf32> -> vector<4x128xf32>
    %c0_9 = arith.constant 0 : index
    %c0_10 = arith.constant 0 : index
    %10 = vector.load %arg6[%c0_9, %c0_10] : memref<4x1xf32, #tpu.memory_space<vmem>>, vector<4x1xf32>
    %11 = vector.broadcast %10 : vector<4x1xf32> to vector<4x128xf32>
    %12 = arith.addf %9, %11 : vector<4x128xf32>
    %c0_11 = arith.constant 0 : index
    %c0_12 = arith.constant 0 : index
    %13 = vector.load %arg2[%c0_11, %c0_12] : memref<1x128xf32, #tpu.memory_space<vmem>>, vector<1x128xf32>
    %14 = vector.broadcast %13 : vector<1x128xf32> to vector<4x128xf32>
    %15 = arith.addf %12, %14 : vector<4x128xf32>
    %c0_13 = arith.constant 0 : index
    %c0_14 = arith.constant 0 : index
    %16 = vector.load %arg7[%c0_13, %c0_14] : memref<4x128xf32, #tpu.memory_space<vmem>>, vector<4x128xf32>
    tpu.vector_store %arg7[%c0_13, %c0_14], %15 {strides = array<i32>} : memref<4x128xf32, #tpu.memory_space<vmem>>, vector<4x128xf32>,
    return
  }
  func.func @transform_0(%arg0: i32) -> (i32, i32) {
    %c0_i32 = arith.constant 0 : i32
    %c0_i32_0 = arith.constant 0 : i32
    return %c0_i32, %arg0 : i32, i32
  }
  func.func @transform_1(%arg0: i32) -> (i32, i32) {
    %c0_i32 = arith.constant 0 : i32
    %c0_i32_0 = arith.constant 0 : i32
    return %c0_i32, %arg0 : i32, i32
  }
  func.func @transform_2(%arg0: i32) -> (i32, i32) {
    %c0_i32 = arith.constant 0 : i32
    %c0_i32_0 = arith.constant 0 : i32
    %c0_i32_1 = arith.constant 0 : i32
    return %c0_i32, %c0_i32_0 : i32, i32
  }
  func.func @transform_3(%arg0: i32) -> (i32, i32) {
    %c0_i32 = arith.constant 0 : i32
    %c0_i32_0 = arith.constant 0 : i32
    %c0_i32_1 = arith.constant 0 : i32
    return %c0_i32, %c0_i32_0 : i32, i32
  }
  func.func @transform_4(%arg0: i32) -> (i32, i32) {
    %c0_i32 = arith.constant 0 : i32
    %c0_i32_0 = arith.constant 0 : i32
    %c0_i32_1 = arith.constant 0 : i32
    return %c0_i32, %c0_i32_0 : i32, i32
  }
  func.func @transform_5(%arg0: i32) -> (i32, i32) {
    %c0_i32 = arith.constant 0 : i32
    %c0_i32_0 = arith.constant 0 : i32
    %c0_i32_1 = arith.constant 0 : i32
    return %c0_i32, %c0_i32_0 : i32, i32
  }
  func.func @transform_6(%arg0: i32) -> (i32, i32) {
    %c0_i32 = arith.constant 0 : i32
    %c0_i32_0 = arith.constant 0 : i32
    return %c0_i32, %arg0 : i32, i32
  }
}

</mosaic_0001>

<llo_original>
// kernel: tpu_custom_call.1
$region0: #{tpu_custom_call.1}
  #allocation0 [shape = 'u32[]', space=smem, size = 0x4, offset = 0x4, fixed_abs, tag = 'smem constant byte address 0x4 - core index']
  #allocation1 [shape = 'u32[144,128]{1,0:T(1,128)}', space=vmem, size = 0x12000, scoped, tag = 'internal scratch']
  %s0 = inlined_call_operand.vmem [shape: f32[32,128], index: 0, kind: input, shape index: {}]
  %s1 = inlined_call_operand.vmem [shape: f32[1,128], index: 1, kind: input, shape index: {}]
  %s2 = inlined_call_operand.hbm [shape: f32[32,32], index: 2, kind: input, shape index: {}]
  %s3 = inlined_call_operand.vmem [shape: f32[32,1], index: 3, kind: input, shape index: {}]
  %s4 = inlined_call_operand.vmem [shape: f32[4,32], index: 4, kind: input, shape index: {}]
  %s5 = inlined_call_operand.vmem [shape: f32[4,1], index: 5, kind: input, shape index: {}]
  %s6 = inlined_call_operand.hbm [shape: f32[4,128], index: 6, kind: output, shape index: {}]
  %s7 = sld [smem:[#allocation0]]
  $region38: #{tpu_custom_call.1} parent=0
    _
  %s9 = ssub.s32 1, %s7
  %s10 = scalar_select 0, %s9, %s7
  $region1: #{tpu_custom_call.1} parent=0
    #allocation2 [shape = 'u8[16384]{0}', space=vmem, size = 0x4000, scoped, tag = 'input window, operand 2, single buffered']
    #allocation3 [shape = 's32[1]{0}', space=sflag, size = 0x4, scoped, tag = 'scoped memory for tpu_custom_call.1']
    #allocation4 [shape = 's32[1]{0}', space=sflag, size = 0x4, scoped, tag = 'scoped memory for tpu_custom_call.1']
    #allocation5 [shape = 'u8[2048]{0}', space=vmem, size = 0x800, scoped, tag = 'output window, operand 0, single buffered']
    %11 = vsyncpa [#allocation3], 0
    %12 = vsyncpa [#allocation4], 0
    // Predicated region
    $region2: #{tpu_custom_call.1} parent=1 // pred_check
      _
    $region3: #{tpu_custom_call.1} parent=1 // pred_check_branch
      %14 = sbr.rel (0) target = $region5
    $region4: #{tpu_custom_call.1} parent=1 // pred_region
      _
    $region5: #{tpu_custom_call.1} parent=1 // pred_fallthru
      _
    // Predicated region
    $region6: #{tpu_custom_call.1} parent=1 // pred_check
      _
    $region7: #{tpu_custom_call.1} parent=1 // pred_check_branch
      %16 = sbr.rel (0) target = $region9
    $region8: #{tpu_custom_call.1} parent=1 // pred_region
      _
    $region9: #{tpu_custom_call.1} parent=1 // pred_fallthru
      _
    // Predicated region
    $region10: #{tpu_custom_call.1} parent=1 // pred_check
      _
    $region11: #{tpu_custom_call.1} parent=1 // pred_check_branch
      %18 = sbr.rel (0) target = $region13
    $region12: #{tpu_custom_call.1} parent=1 // pred_region
      %s20 = ssub.s32 512, 512
      %21 = vsyncadd [#allocation3], %s20
      %s22 = sshll.u32 [#allocation2], 4
      %s23 = int_to_ptr.vmem [resolvable:$true] %s22
      %28 = dma.hbm_to_vmem [thread:$0]  %s2, 512, %s23, [#allocation3], 128, 128, 8
    $region13: #{tpu_custom_call.1} parent=1 // pred_fallthru
      _
    // Predicated region
    $region14: #{tpu_custom_call.1} parent=1 // pred_check
      _
    $region15: #{tpu_custom_call.1} parent=1 // pred_check_branch
      %30 = sbr.rel (0) target = $region17
    $region16: #{tpu_custom_call.1} parent=1 // pred_region
      _
    $region17: #{tpu_custom_call.1} parent=1 // pred_fallthru
      _
    // Predicated region
    $region18: #{tpu_custom_call.1} parent=1 // pred_check
      _
    $region19: #{tpu_custom_call.1} parent=1 // pred_check_branch
      %32 = sbr.rel (0) target = $region21
    $region20: #{tpu_custom_call.1} parent=1 // pred_region
      _
    $region21: #{tpu_custom_call.1} parent=1 // pred_fallthru
      _
    // Predicated region
    $region22: #{tpu_custom_call.1} parent=1 // pred_check
      _
    $region23: #{tpu_custom_call.1} parent=1 // pred_check_branch
      %34 = sbr.rel (0) target = $region25
    $region24: #{tpu_custom_call.1} parent=1 // pred_region
      _
    $region25: #{tpu_custom_call.1} parent=1 // pred_fallthru
      _
    // Predicated region
    $region26: #{tpu_custom_call.1} parent=1 // pred_check
      _
    $region27: #{tpu_custom_call.1} parent=1 // pred_check_branch
      %36 = sbr.rel (0) target = $region29
    $region28: #{tpu_custom_call.1} parent=1 // pred_region
      %37 = dma.done [#allocation3], 512
    $region29: #{tpu_custom_call.1} parent=1 // pred_fallthru
      _
    %v38 = vld [vmem:[#allocation2] sm:$0xff]
    %v39 = vld [vmem:[#allocation2 + $0x8] sm:$0xff]
    %v40 = vld [vmem:[#allocation2 + $0x10] sm:$0xff]
    %v41 = vld [vmem:[#allocation2 + $0x18] sm:$0xff]
    %v42 = vld [vmem:[%s0] sm:$0xff]
    %v43 = vld [vmem:[%s0 + $0x8] sm:$0xff]
    %v44 = vld [vmem:[%s0 + $0x10] sm:$0xff]
    %v45 = vld [vmem:[%s0 + $0x18] sm:$0xff]
    %v46 = vld [vmem:[%s3] sm:$0xff]
    %v47 = vld [vmem:[%s3 + $0x8] sm:$0xff]
    %v48 = vld [vmem:[%s3 + $0x10] sm:$0xff]
    %v49 = vld [vmem:[%s3 + $0x18] sm:$0xff]
    %51 = vset.pattern.permute.xlu0 0
    %52 = vperm.xlu0 %51, %v46
    %v53 = vpop.permute.xlu0 %52
    %56 = vset.pattern.permute.xlu0 0
    %57 = vperm.xlu0 %56, %v47
    %v58 = vpop.permute.xlu0 %57
    %61 = vset.pattern.permute.xlu0 0
    %62 = vperm.xlu0 %61, %v48
    %v63 = vpop.permute.xlu0 %62
    %66 = vset.pattern.permute.xlu0 0
    %67 = vperm.xlu0 %66, %v49
    %v68 = vpop.permute.xlu0 %67
    %vm70 = vcmask 261120
    %v72 = vsel %vm70, %v38, 0
    %v75 = vsel %vm70, %v39, 0
    %v78 = vsel %vm70, %v40, 0
    %v81 = vsel %vm70, %v41, 0
    %83 = vmatprep.subr.mxu0 0.0
    %84 = vmatpush1.msra.mxu0 %v42
    %85 = vmatprep.subr.mxu0 0.0
    %86 = vmatpush1.msra.mxu0 %v43
    %87 = vmatprep.subr.mxu0 0.0
    %88 = vmatpush1.msra.mxu0 %v44
    %89 = vmatprep.subr.mxu0 0.0
    %90 = vmatpush1.msra.mxu0 %v45
    %91 = vmatprep.subr.mxu0 0.0
    %92 = vmatpush1.msra.mxu0 0.0
    %93 = vmatprep.subr.mxu0 0.0
    %94 = vmatpush1.msra.mxu0 0.0
    %95 = vmatprep.subr.mxu0 0.0
    %96 = vmatpush1.msra.mxu0 0.0
    %97 = vmatprep.subr.mxu0 0.0
    %98 = vmatpush1.msra.mxu0 0.0
    %99 = vmatprep.subr.mxu0 0.0
    %100 = vmatpush1.msra.mxu0 0.0
    %101 = vmatprep.subr.mxu0 0.0
    %102 = vmatpush1.msra.mxu0 0.0
    %103 = vmatprep.subr.mxu0 0.0
    %104 = vmatpush1.msra.mxu0 0.0
    %105 = vmatprep.subr.mxu0 0.0
    %106 = vmatpush1.msra.mxu0 0.0
    %107 = vmatprep.subr.mxu0 0.0
    %108 = vmatpush1.msra.mxu0 0.0
    %109 = vmatprep.subr.mxu0 0.0
    %110 = vmatpush1.msra.mxu0 0.0
    %111 = vmatprep.subr.mxu0 0.0
    %112 = vmatpush1.msra.mxu0 0.0
    %113 = vmatprep.subr.mxu0 0.0
    %114 = vmatpush1.msra.mxu0 0.0
    %115 = vmatprep.subr.mxu0 0.0
    %116 = vmatpush1.msra.mxu0 0.0
    %117 = vmatprep.subr.mxu0 0.0
    %118 = vmatpush1.msra.mxu0 0.0
    %119 = vmatprep.subr.mxu0 0.0
    %120 = vmatpush1.msra.mxu0 0.0
    %121 = vmatprep.subr.mxu0 0.0
    %122 = vmatpush1.msra.mxu0 0.0
    %123 = vmatprep.subr.mxu0 0.0
    %124 = vmatpush1.msra.mxu0 0.0
    %125 = vmatprep.subr.mxu0 0.0
    %126 = vmatpush1.msra.mxu0 0.0
    %127 = vmatprep.subr.mxu0 0.0
    %128 = vmatpush1.msra.mxu0 0.0
    %129 = vmatprep.subr.mxu0 0.0
    %130 = vmatpush1.msra.mxu0 0.0
    %131 = vmatprep.subr.mxu0 0.0
    %132 = vmatpush1.msra.mxu0 0.0
    %133 = vmatprep.subr.mxu0 0.0
    %134 = vmatpush1.msra.mxu0 0.0
    %135 = vmatprep.subr.mxu0 0.0
    %136 = vmatpush1.msra.mxu0 0.0
    %137 = vmatprep.subr.mxu0 0.0
    %138 = vmatpush1.msra.mxu0 0.0
    %139 = vmatprep.subr.mxu0 0.0
    %140 = vmatpush1.msra.mxu0 0.0
    %141 = vmatprep.subr.mxu0 0.0
    %142 = vmatpush1.msra.mxu0 0.0
    %143 = vmatprep.subr.mxu0 0.0
    %144 = vmatpush1.msra.mxu0 0.0
    %145 = vmatprep.subr.mxu0 0.0
    %146 = vmatpush1.msra.mxu0 0.0
    %147 = vmatprep.mubr.f32.mxu0 0.0
    %148 = vmatmul.mubr.f32.gmra.mrb[0].mxu0 %v72
    %v149 = vpop.f32.mrb[0].mxu0
    %v150 = vadd.f32 %v53, %v149
    %v151 = vpop.f32.mrb[0].mxu0
    %152 = vmatprep.mubr.f32.mxu0 0.0
    %153 = vmatmul.mubr.f32.gmra.mrb[0].mxu0 %v75
    %v154 = vpop.f32.mrb[0].mxu0
    %v155 = vadd.f32 %v58, %v154
    %v156 = vpop.f32.mrb[0].mxu0
    %157 = vmatprep.mubr.f32.mxu0 0.0
    %158 = vmatmul.mubr.f32.gmra.mrb[0].mxu0 %v78
    %v159 = vpop.f32.mrb[0].mxu0
    %v160 = vadd.f32 %v63, %v159
    %v161 = vpop.f32.mrb[0].mxu0
    %162 = vmatprep.mubr.f32.mxu0 0.0
    %163 = vmatmul.mubr.f32.gmra.mrb[0].mxu0 %v81
    %v164 = vpop.f32.mrb[0].mxu0
    %v165 = vadd.f32 %v68, %v164
    %v166 = vpop.f32.mrb[0].mxu0
    %167 = vdwg.mxu0
    %v168 = vmax.f32 %v150, 0.0
    %v169 = vmax.f32 %v155, 0.0
    %v170 = vmax.f32 %v160, 0.0
    %v171 = vmax.f32 %v165, 0.0
    %v172 = vld [vmem:[%s4] sm:$0xf]
    %v173 = vld [vmem:[%s5] sm:$0xf]
    %175 = vset.pattern.permute.xlu0 0
    %176 = vperm.xlu0 %175, %v173
    %v177 = vpop.permute.xlu0 %176
    %v180 = vsel %vm70, %v172, 0
    %182 = vmatprep.subr.mxu0 0.0
    %183 = vmatpush1.msra.mxu0 %v168
    %184 = vmatprep.subr.mxu0 0.0
    %185 = vmatpush1.msra.mxu0 %v169
    %186 = vmatprep.subr.mxu0 0.0
    %187 = vmatpush1.msra.mxu0 %v170
    %188 = vmatprep.subr.mxu0 0.0
    %189 = vmatpush1.msra.mxu0 %v171
    %190 = vmatprep.subr.mxu0 0.0
    %191 = vmatpush1.msra.mxu0 0.0
    %192 = vmatprep.subr.mxu0 0.0
    %193 = vmatpush1.msra.mxu0 0.0
    %194 = vmatprep.subr.mxu0 0.0
    %195 = vmatpush1.msra.mxu0 0.0
    %196 = vmatprep.subr.mxu0 0.0
    %197 = vmatpush1.msra.mxu0 0.0
    %198 = vmatprep.subr.mxu0 0.0
    %199 = vmatpush1.msra.mxu0 0.0
    %200 = vmatprep.subr.mxu0 0.0
    %201 = vmatpush1.msra.mxu0 0.0
    %202 = vmatprep.subr.mxu0 0.0
    %203 = vmatpush1.msra.mxu0 0.0
    %204 = vmatprep.subr.mxu0 0.0
    %205 = vmatpush1.msra.mxu0 0.0
    %206 = vmatprep.subr.mxu0 0.0
    %207 = vmatpush1.msra.mxu0 0.0
    %208 = vmatprep.subr.mxu0 0.0
    %209 = vmatpush1.msra.mxu0 0.0
    %210 = vmatprep.subr.mxu0 0.0
    %211 = vmatpush1.msra.mxu0 0.0
    %212 = vmatprep.subr.mxu0 0.0
    %213 = vmatpush1.msra.mxu0 0.0
    %214 = vmatprep.subr.mxu0 0.0
    %215 = vmatpush1.msra.mxu0 0.0
    %216 = vmatprep.subr.mxu0 0.0
    %217 = vmatpush1.msra.mxu0 0.0
    %218 = vmatprep.subr.mxu0 0.0
    %219 = vmatpush1.msra.mxu0 0.0
    %220 = vmatprep.subr.mxu0 0.0
    %221 = vmatpush1.msra.mxu0 0.0
    %222 = vmatprep.subr.mxu0 0.0
    %223 = vmatpush1.msra.mxu0 0.0
    %224 = vmatprep.subr.mxu0 0.0
    %225 = vmatpush1.msra.mxu0 0.0
    %226 = vmatprep.subr.mxu0 0.0
    %227 = vmatpush1.msra.mxu0 0.0
    %228 = vmatprep.subr.mxu0 0.0
    %229 = vmatpush1.msra.mxu0 0.0
    %230 = vmatprep.subr.mxu0 0.0
    %231 = vmatpush1.msra.mxu0 0.0
    %232 = vmatprep.subr.mxu0 0.0
    %233 = vmatpush1.msra.mxu0 0.0
    %234 = vmatprep.subr.mxu0 0.0
    %235 = vmatpush1.msra.mxu0 0.0
    %236 = vmatprep.subr.mxu0 0.0
    %237 = vmatpush1.msra.mxu0 0.0
    %238 = vmatprep.subr.mxu0 0.0
    %239 = vmatpush1.msra.mxu0 0.0
    %240 = vmatprep.subr.mxu0 0.0
    %241 = vmatpush1.msra.mxu0 0.0
    %242 = vmatprep.subr.mxu0 0.0
    %243 = vmatpush1.msra.mxu0 0.0
    %244 = vmatprep.subr.mxu0 0.0
    %245 = vmatpush1.msra.mxu0 0.0
    %246 = vmatprep.mubr.f32.mxu0 0.0
    %247 = vmatmul.mubr.f32.gmra.mrb[0].mxu0 %v180
    %v248 = vpop.f32.mrb[0].mxu0
    %v249 = vadd.f32 %v177, %v248
    %v250 = vpop.f32.mrb[0].mxu0
    %251 = vdwg.mxu0
    %v252 = vld [vmem:[%s1] sm:$0x1]
    %v254 = vlaneseq
    %v255 = vshrl.u32 %v254, 7
    %v256 = vsub.s32 0, %v255
    %v257 = vrot.slane %v252, %v256
    %v259 = vadd.f32 %v249, %v257
    %260 = vst [vmem:[#allocation5] sm:$0xf] %v259
    // Predicated region
    $region30: #{tpu_custom_call.1} parent=1 // pred_check
      _
    $region31: #{tpu_custom_call.1} parent=1 // pred_check_branch
      %262 = sbr.rel (0) target = $region33
    $region32: #{tpu_custom_call.1} parent=1 // pred_region
      %s264 = ssub.s32 64, 64
      %265 = vsyncadd [#allocation4], %s264
      %s267 = sshll.u32 [#allocation5], 4
      %s268 = int_to_ptr.vmem [resolvable:$true] %s267
      %270 = dma.vmem_to_hbm [thread:$0]  %s268, 64, %s6, [#allocation4]
    $region33: #{tpu_custom_call.1} parent=1 // pred_fallthru
      _
    // Predicated region
    $region34: #{tpu_custom_call.1} parent=1 // pred_check
      _
    $region35: #{tpu_custom_call.1} parent=1 // pred_check_branch
      %272 = sbr.rel (0) target = $region37
    $region36: #{tpu_custom_call.1} parent=1 // pred_region
      %273 = dma.done [#allocation4], 64
    $region37: #{tpu_custom_call.1} parent=1 // pred_fallthru
      _
    %274 = vsyncpa [#allocation3], 1
    %275 = vsyncpa [#allocation4], 1

</llo_original>
